<compile_context>
chip_gen: v7x
topology: tpu7x:2x2x1
jax: 0.10.0
libtpu: 0.0.40
codegen_flags: <defaults>
</compile_context>

<pallas_src>
import functools

import numpy as np
import jax
import jax.numpy as jnp
from jax.experimental import pallas as pl
from jax.experimental.pallas import tpu as pltpu


def _make_upsample_matrix(n_in):
    """Row matrix U of shape (2*n_in, n_in) reproducing torch bilinear x2,
    align_corners=False:  src = max(0.5*dst - 0.25, 0)."""
    n_out = 2 * n_in
    U = np.zeros((n_out, n_in), dtype=np.float32)
    for o in range(n_out):
        src = max(0.5 * o - 0.25, 0.0)
        i0 = int(np.floor(src))
        lam = src - i0
        i1 = min(i0 + 1, n_in - 1)
        U[o, i0] += 1.0 - lam
        U[o, i1] += lam
    return U


def _psp_upsample_kernel(cout, ow, x_ref, uh_ref, v_ref, scale_ref, shift_ref,
                         alpha_ref, o_ref):
    # x_ref:     (1, h, cin*w)        VMEM  channel-packed input rows (lane-dense)
    # uh_ref:    (3, oh, h)           VMEM  row-shifted bilinear H matrices (ky taps)
    # v_ref:     (cin*w, 3*cout*ow)   VMEM  folded [upsample-W x conv-kx x channel-mix]
    # scale_ref: (1, cout*ow)         VMEM  folded BN scale (per output column)
    # shift_ref: (1, cout*ow)         VMEM  folded BN shift + conv bias
    # alpha_ref: (1, cout*ow)         VMEM  PReLU slope (per output column)
    # o_ref:     (1, oh, cout*ow)     VMEM  lane-dense output slab
    cw = cout * ow
    oh = o_ref.shape[1]

    x2 = x_ref[0]                                                     # (h, cin*w)
    # Upsample-W + horizontal conv taps + cross-channel mix: one MXU matmul.
    g = jnp.dot(x2, v_ref[...], preferred_element_type=jnp.float32)  # (h, 3*cw)

    # Upsample-H + vertical conv taps: 3 MXU matmuls, accumulate in f32.
    acc = jnp.zeros((oh, cw), jnp.float32)
    for ky in range(3):
        # column slice at a multiple of 128 lanes (cw = cout*ow) -> no relayout
        acc = acc + jnp.dot(uh_ref[ky], g[:, ky * cw:(ky + 1) * cw],
                            preferred_element_type=jnp.float32)

    # Conv bias + BatchNorm (folded) + PReLU, all lane-dense VPU work.
    y = acc * scale_ref[...] + shift_ref[...]
    y = jnp.where(y >= 0.0, y, alpha_ref[...] * y)
    o_ref[0] = y


def psp_upsample(x, conv_w, conv_b, gamma, beta, run_mean, run_var, alpha,
                 eps=1e-5):
    n, cin, h, w = x.shape
    cout = conv_w.shape[0]
    oh, ow = 2 * h, 2 * w
    cw = cout * ow

    # ---- static upsample matrices with the conv taps' spatial shift folded in
    Uh = _make_upsample_matrix(h)          # (oh, h)
    Uw = _make_upsample_matrix(w)          # (ow, w)
    uh_sh = np.zeros((3, oh, h), np.float32)     # Uh_pad[r + ky - 1, :]
    uwt_sh = np.zeros((3, w, ow), np.float32)    # Uw_pad[col + kx - 1, :]^T
    for k in range(3):
        for r in range(oh):
            s = r + k - 1
            if 0 <= s < oh:
                uh_sh[k, r, :] = Uh[s, :]
        for col in range(ow):
            s = col + k - 1
            if 0 <= s < ow:
                uwt_sh[k, :, col] = Uw[s, :]
    uh_sh = jnp.asarray(uh_sh)

    # ---- fold conv weights + W-upsample + kx taps into a single VMEM matrix
    # Vbig[(c, wi), (ky, o, col)] = sum_kx conv_w[o, c, ky, kx] * uwt_sh[kx, wi, col]
    vbig = jnp.einsum('ocyx,xwl->cwyol', conv_w.astype(jnp.float32),
                      jnp.asarray(uwt_sh)).reshape(cin * w, 3 * cw)

    # ---- fold conv bias + BatchNorm (inference) into per-output-column rows
    scale = gamma / jnp.sqrt(run_var + eps)
    shift = beta + (conv_b - run_mean) * scale
    scale_row = jnp.repeat(scale.astype(jnp.float32), ow)[None, :]        # (1, cw)
    shift_row = jnp.repeat(shift.astype(jnp.float32), ow)[None, :]        # (1, cw)
    alpha_vec = jnp.broadcast_to(jnp.asarray(alpha, jnp.float32), (cout,))
    alpha_row = jnp.repeat(alpha_vec, ow)[None, :]                        # (1, cw)

    # ---- lane-dense input layout: (n, h, cin*w)
    x2 = x.astype(jnp.float32).transpose(0, 2, 1, 3).reshape(n, h, cin * w)

    kern = functools.partial(_psp_upsample_kernel, cout, ow)
    out = pl.pallas_call(
        kern,
        out_shape=jax.ShapeDtypeStruct((n, oh, cw), jnp.float32),
        grid=(n,),
        in_specs=[
            pl.BlockSpec((1, h, cin * w), lambda i: (i, 0, 0)),
            pl.BlockSpec((3, oh, h), lambda i: (0, 0, 0)),
            pl.BlockSpec((cin * w, 3 * cw), lambda i: (0, 0)),
            pl.BlockSpec((1, cw), lambda i: (0, 0)),
            pl.BlockSpec((1, cw), lambda i: (0, 0)),
            pl.BlockSpec((1, cw), lambda i: (0, 0)),
        ],
        out_specs=pl.BlockSpec((1, oh, cw), lambda i: (i, 0, 0)),
        compiler_params=pltpu.CompilerParams(
            dimension_semantics=("parallel",)),
    )(x2, uh_sh, vbig, scale_row, shift_row, alpha_row)

    # back to NCHW (cheap XLA transpose outside the kernel)
    return out.reshape(n, oh, cout, ow).transpose(0, 2, 1, 3)


def reference(x, conv_w, conv_b, gamma, beta, run_mean, run_var, alpha,
              eps=1e-5):
    """Pure-JAX reference of the PyTorch forward (inference-mode BN)."""
    h, w = x.shape[2], x.shape[3]
    Uh = jnp.asarray(_make_upsample_matrix(h))
    Uw = jnp.asarray(_make_upsample_matrix(w))
    p = jnp.einsum('Hh,nchw->ncHw', Uh, x)
    p = jnp.einsum('Ww,ncHw->ncHW', Uw, p)
    y = jax.lax.conv_general_dilated(
        p, conv_w, window_strides=(1, 1), padding=((1, 1), (1, 1)),
        dimension_numbers=('NCHW', 'OIHW', 'NCHW'))
    y = y + conv_b[None, :, None, None]
    inv = 1.0 / jnp.sqrt(run_var + eps)
    y = (y - run_mean[None, :, None, None]) * (gamma * inv)[None, :, None, None] \
        + beta[None, :, None, None]
    return jnp.where(y >= 0.0, y, alpha * y)


if __name__ == "__main__":
    N, CIN, COUT, H, W = 2, 4, 8, 16, 16

    key = jax.random.PRNGKey(0)
    ks = jax.random.split(key, 7)
    x = jax.random.normal(ks[0], (N, CIN, H, W), jnp.float32)
    conv_w = 0.1 * jax.random.normal(ks[1], (COUT, CIN, 3, 3), jnp.float32)
    conv_b = 0.1 * jax.random.normal(ks[2], (COUT,), jnp.float32)
    gamma = 1.0 + 0.1 * jax.random.normal(ks[3], (COUT,), jnp.float32)
    beta = 0.1 * jax.random.normal(ks[4], (COUT,), jnp.float32)
    run_mean = 0.1 * jax.random.normal(ks[5], (COUT,), jnp.float32)
    run_var = jax.random.uniform(ks[6], (COUT,), jnp.float32, 0.5, 1.5)
    alpha = 0.25  # PyTorch nn.PReLU() default init

    out = psp_upsample(x, conv_w, conv_b, gamma, beta, run_mean, run_var, alpha)
    out = jax.block_until_ready(out)

    ref = reference(x, conv_w, conv_b, gamma, beta, run_mean, run_var, alpha)
    assert out.shape == (N, COUT, 2 * H, 2 * W), out.shape
    if not np.allclose(np.asarray(out), np.asarray(ref), rtol=5e-3, atol=5e-3):
        diff = np.max(np.abs(np.asarray(out) - np.asarray(ref)))
        raise AssertionError(f"kernel/reference mismatch, max abs diff = {diff}")

    print("KERNEL_OK")
</pallas_src>

<mosaic_0001>
module attributes {stable_mosaic.version = 11 : i64} {
  func.func @_psp_upsample_kernel(%arg0: i32, %arg1: memref<1x16x64xf32, #tpu.memory_space<vmem>>, %arg2: memref<3x32x16xf32, #tpu.memory_space<vmem>>, %arg3: memref<64x768xf32, #tpu.memory_space<vmem>>, %arg4: memref<1x256xf32, #tpu.memory_space<vmem>>, %arg5: memref<1x256xf32, #tpu.memory_space<vmem>>, %arg6: memref<1x256xf32, #tpu.memory_space<vmem>>, %arg7: memref<1x32x256xf32, #tpu.memory_space<vmem>>) attributes {dimension_semantics = [#tpu.dimension_semantics<parallel>], iteration_bounds = array<i64: 2>, scalar_prefetch = 0 : i64, scratch_operands = 0 : i64, tpu.core_type = #tpu.core_type<tc>, window_params = [{transform_indices = @transform_0, window_bounds = array<i64: 1, 16, 64>}, {pipeline_mode = #tpu.pipeline_mode<synchronous>, transform_indices = @transform_1, window_bounds = array<i64: 3, 32, 16>}, {pipeline_mode = #tpu.pipeline_mode<synchronous>, transform_indices = @transform_2, window_bounds = array<i64: 64, 768>}, {pipeline_mode = #tpu.pipeline_mode<synchronous>, transform_indices = @transform_3, window_bounds = array<i64: 1, 256>}, {pipeline_mode = #tpu.pipeline_mode<synchronous>, transform_indices = @transform_4, window_bounds = array<i64: 1, 256>}, {pipeline_mode = #tpu.pipeline_mode<synchronous>, transform_indices = @transform_5, window_bounds = array<i64: 1, 256>}, {transform_indices = @transform_6, window_bounds = array<i64: 1, 32, 256>}]} {
    %c0 = arith.constant 0 : index
    %c0_0 = arith.constant 0 : index
    %c0_1 = arith.constant 0 : index
    %0 = vector.load %arg1[%c0, %c0_0, %c0_1] : memref<1x16x64xf32, #tpu.memory_space<vmem>>, vector<1x16x64xf32>
    %1 = vector.shape_cast %0 : vector<1x16x64xf32> to vector<16x64xf32>
    %c0_2 = arith.constant 0 : index
    %c0_3 = arith.constant 0 : index
    %2 = vector.load %arg3[%c0_2, %c0_3] : memref<64x768xf32, #tpu.memory_space<vmem>>, vector<64x768xf32>
    %cst = arith.constant dense<0.000000e+00> : vector<16x768xf32>
    %3 = tpu.matmul %1, %2, %cst {dimension_numbers = #tpu.dot_dimension_numbers<[1], [0], [0], [1], [0, 0, 1, 1], [], []>} : vector<16x64xf32>, vector<64x768xf32>, vector<16x768xf32> -> vector<16x768xf32>
    %cst_4 = arith.constant 0.000000e+00 : f32
    %4 = vector.broadcast %cst_4 : f32 to vector<32x256xf32>
    %c0_5 = arith.constant 0 : index
    %c0_6 = arith.constant 0 : index
    %c0_7 = arith.constant 0 : index
    %5 = vector.load %arg2[%c0_5, %c0_6, %c0_7] : memref<3x32x16xf32, #tpu.memory_space<vmem>>, vector<1x32x16xf32>
    %6 = vector.shape_cast %5 : vector<1x32x16xf32> to vector<32x16xf32>
    %7 = vector.extract_strided_slice %3 {offsets = [0, 0], sizes = [16, 256], strides = [1, 1]} : vector<16x768xf32> to vector<16x256xf32>
    %cst_8 = arith.constant dense<0.000000e+00> : vector<32x256xf32>
    %8 = tpu.matmul %6, %7, %cst_8 {dimension_numbers = #tpu.dot_dimension_numbers<[1], [0], [0], [1], [0, 0, 1, 1], [], []>} : vector<32x16xf32>, vector<16x256xf32>, vector<32x256xf32> -> vector<32x256xf32>
    %9 = arith.addf %4, %8 : vector<32x256xf32>
    %c1 = arith.constant 1 : index
    %c0_9 = arith.constant 0 : index
    %c0_10 = arith.constant 0 : index
    %10 = vector.load %arg2[%c1, %c0_9, %c0_10] : memref<3x32x16xf32, #tpu.memory_space<vmem>>, vector<1x32x16xf32>
    %11 = vector.shape_cast %10 : vector<1x32x16xf32> to vector<32x16xf32>
    %12 = vector.extract_strided_slice %3 {offsets = [0, 256], sizes = [16, 256], strides = [1, 1]} : vector<16x768xf32> to vector<16x256xf32>
    %cst_11 = arith.constant dense<0.000000e+00> : vector<32x256xf32>
    %13 = tpu.matmul %11, %12, %cst_11 {dimension_numbers = #tpu.dot_dimension_numbers<[1], [0], [0], [1], [0, 0, 1, 1], [], []>} : vector<32x16xf32>, vector<16x256xf32>, vector<32x256xf32> -> vector<32x256xf32>
    %14 = arith.addf %9, %13 : vector<32x256xf32>
    %c2 = arith.constant 2 : index
    %c0_12 = arith.constant 0 : index
    %c0_13 = arith.constant 0 : index
    %15 = vector.load %arg2[%c2, %c0_12, %c0_13] : memref<3x32x16xf32, #tpu.memory_space<vmem>>, vector<1x32x16xf32>
    %16 = vector.shape_cast %15 : vector<1x32x16xf32> to vector<32x16xf32>
    %17 = vector.extract_strided_slice %3 {offsets = [0, 512], sizes = [16, 256], strides = [1, 1]} : vector<16x768xf32> to vector<16x256xf32>
    %cst_14 = arith.constant dense<0.000000e+00> : vector<32x256xf32>
    %18 = tpu.matmul %16, %17, %cst_14 {dimension_numbers = #tpu.dot_dimension_numbers<[1], [0], [0], [1], [0, 0, 1, 1], [], []>} : vector<32x16xf32>, vector<16x256xf32>, vector<32x256xf32> -> vector<32x256xf32>
    %19 = arith.addf %14, %18 : vector<32x256xf32>
    %c0_15 = arith.constant 0 : index
    %c0_16 = arith.constant 0 : index
    %20 = vector.load %arg4[%c0_15, %c0_16] : memref<1x256xf32, #tpu.memory_space<vmem>>, vector<1x256xf32>
    %21 = vector.broadcast %20 : vector<1x256xf32> to vector<32x256xf32>
    %22 = arith.mulf %19, %21 : vector<32x256xf32>
    %c0_17 = arith.constant 0 : index
    %c0_18 = arith.constant 0 : index
    %23 = vector.load %arg5[%c0_17, %c0_18] : memref<1x256xf32, #tpu.memory_space<vmem>>, vector<1x256xf32>
    %24 = vector.broadcast %23 : vector<1x256xf32> to vector<32x256xf32>
    %25 = arith.addf %22, %24 : vector<32x256xf32>
    %cst_19 = arith.constant 0.000000e+00 : f32
    %26 = vector.broadcast %cst_19 : f32 to vector<32x256xf32>
    %27 = arith.cmpf oge, %25, %26 : vector<32x256xf32>
    %c0_20 = arith.constant 0 : index
    %c0_21 = arith.constant 0 : index
    %28 = vector.load %arg6[%c0_20, %c0_21] : memref<1x256xf32, #tpu.memory_space<vmem>>, vector<1x256xf32>
    %29 = vector.broadcast %28 : vector<1x256xf32> to vector<32x256xf32>
    %30 = arith.mulf %29, %25 : vector<32x256xf32>
    %31 = arith.select %27, %25, %30 : vector<32x256xi1>, vector<32x256xf32>
    %c0_22 = arith.constant 0 : index
    %c0_23 = arith.constant 0 : index
    %c0_24 = arith.constant 0 : index
    %32 = vector.load %arg7[%c0_22, %c0_23, %c0_24] : memref<1x32x256xf32, #tpu.memory_space<vmem>>, vector<1x32x256xf32>
    %33 = vector.shape_cast %32 : vector<1x32x256xf32> to vector<32x256xf32>
    %34 = vector.shape_cast %31 : vector<32x256xf32> to vector<1x32x256xf32>
    tpu.vector_store %arg7[%c0_22, %c0_23, %c0_24], %34 {strides = array<i32>} : memref<1x32x256xf32, #tpu.memory_space<vmem>>, vector<1x32x256xf32>,
    return
  }
  func.func @transform_0(%arg0: i32) -> (i32, i32, i32) {
    %c0_i32 = arith.constant 0 : i32
    %c0_i32_0 = arith.constant 0 : i32
    %c0_i32_1 = arith.constant 0 : i32
    return %arg0, %c0_i32, %c0_i32_0 : i32, i32, i32
  }
  func.func @transform_1(%arg0: i32) -> (i32, i32, i32) {
    %c0_i32 = arith.constant 0 : i32
    %c0_i32_0 = arith.constant 0 : i32
    %c0_i32_1 = arith.constant 0 : i32
    %c0_i32_2 = arith.constant 0 : i32
    return %c0_i32, %c0_i32_0, %c0_i32_1 : i32, i32, i32
  }
  func.func @transform_2(%arg0: i32) -> (i32, i32) {
    %c0_i32 = arith.constant 0 : i32
    %c0_i32_0 = arith.constant 0 : i32
    %c0_i32_1 = arith.constant 0 : i32
    return %c0_i32, %c0_i32_0 : i32, i32
  }
  func.func @transform_3(%arg0: i32) -> (i32, i32) {
    %c0_i32 = arith.constant 0 : i32
    %c0_i32_0 = arith.constant 0 : i32
    %c0_i32_1 = arith.constant 0 : i32
    return %c0_i32, %c0_i32_0 : i32, i32
  }
  func.func @transform_4(%arg0: i32) -> (i32, i32) {
    %c0_i32 = arith.constant 0 : i32
    %c0_i32_0 = arith.constant 0 : i32
    %c0_i32_1 = arith.constant 0 : i32
    return %c0_i32, %c0_i32_0 : i32, i32
  }
  func.func @transform_5(%arg0: i32) -> (i32, i32) {
    %c0_i32 = arith.constant 0 : i32
    %c0_i32_0 = arith.constant 0 : i32
    %c0_i32_1 = arith.constant 0 : i32
    return %c0_i32, %c0_i32_0 : i32, i32
  }
  func.func @transform_6(%arg0: i32) -> (i32, i32, i32) {
    %c0_i32 = arith.constant 0 : i32
    %c0_i32_0 = arith.constant 0 : i32
    %c0_i32_1 = arith.constant 0 : i32
    return %arg0, %c0_i32, %c0_i32_0 : i32, i32, i32
  }
}

</mosaic_0001>

<llo_original>
// kernel: tpu_custom_call.1
$region0: #{tpu_custom_call.1}
  #allocation0 [shape = 'u32[]', space=smem, size = 0x4, offset = 0x4, fixed_abs, tag = 'smem constant byte address 0x4 - core index']
  #allocation1 [shape = 'u32[144,128]{1,0:T(1,128)}', space=vmem, size = 0x12000, scoped, tag = 'internal scratch']
  %s0 = inlined_call_operand.vmem [shape: f32[2,16,64], index: 0, kind: input, shape index: {}]
  %s1 = inlined_call_operand.vmem [shape: f32[3,32,16], index: 1, kind: input, shape index: {}]
  %s2 = inlined_call_operand.hbm [shape: f32[64,768], index: 2, kind: input, shape index: {}]
  %s3 = inlined_call_operand.vmem [shape: f32[1,256], index: 3, kind: input, shape index: {}]
  %s4 = inlined_call_operand.vmem [shape: f32[1,256], index: 4, kind: input, shape index: {}]
  %s5 = inlined_call_operand.vmem [shape: f32[1,256], index: 5, kind: input, shape index: {}]
  %s6 = inlined_call_operand.hbm [shape: f32[2,32,256], index: 6, kind: output, shape index: {}]
  %s7 = sld [smem:[#allocation0]]
  $region61: #{tpu_custom_call.1} parent=0
    _
  %s9 = ssub.s32 1, %s7
  %s10 = scalar_select 0, %s9, %s7
  $region1: #{tpu_custom_call.1} parent=0
    #allocation2 [shape = 'u8[196608]{0}', space=vmem, size = 0x30000, scoped, tag = 'input window, operand 2, single buffered']
    #allocation3 [shape = 's32[2]{0}', space=sflag, size = 0x8, scoped, tag = 'scoped memory for tpu_custom_call.1']
    #allocation4 [shape = 's32[2]{0}', space=sflag, size = 0x8, scoped, tag = 'scoped memory for tpu_custom_call.1']
    #allocation5 [shape = 'u8[65536]{0}', space=vmem, size = 0x10000, scoped, tag = 'output window, operand 0']
    %11 = vsyncpa [#allocation3], 0
    %12 = vsyncpa [#allocation4], 0
    %s13 = scalar_lea.sflag [#allocation4], 1
    %14 = vsyncpa %s13, 0
    loop: start=0, step=1, limit=4
    $region2: #{tpu_custom_call.1} parent=1 // loop_pre_header
      _
    $region3: #{tpu_custom_call.1} parent=1 // loop_header
      %s16 = sphi 0, %s20
      %p17 = scmp.ge.s32.totalorder %s16, 4
      %s26 = sphi 0, %s28
      %s29 = sphi 0, %s26
      %s30 = sphi 0, %s29
      %s46 = sphi 0, %s30
      %s50 = sphi 0, %s50
      %s52 = sphi 0, %s50
      %s53 = sphi 0, %s52
      %s67 = sphi 0, %s53
      %s71 = sphi 0, %s71
      %s73 = sphi 0, %s71
      %s74 = sphi 0, %s73
      %s88 = sphi 0, %s74
      %s92 = sphi 0, %s92
      %s94 = sphi 0, %s92
      %s95 = sphi 0, %s94
      %s109 = sphi 0, %s95
      %s113 = sphi 0, %s113
      %s115 = sphi 0, %s113
      %s116 = sphi 0, %s115
      %s130 = sphi 0, %s116
      %s134 = sphi 0, %s134
      %s136 = sphi 0, %s134
      %s137 = sphi 0, %s136
      %s151 = sphi 0, %s137
      %s157 = sphi 0, %s159
      %s160 = sphi 0, %s157
      %s161 = sphi 0, %s160
      %s177 = sphi 0, %s161
    $region4: #{tpu_custom_call.1} parent=1 // loop_header_branch
      %19 = sbr.rel (%p17) target = $region8
    $region5: #{tpu_custom_call.1} parent=1 // loop_body
      %s21 = ssub.s32 %s16, 1
      %s22 = ssub.s32 %s16, 2
      %s23 = sadd.s32 %s16, 1
      %s24 = ssub.s32 %s16, %s23
      %p25 = scmp.eq.s32.totalorder %s24, 0
      %s27 = sadd.s32 %s26, 1
      %s28 = scalar_select %p25, %s26, %s27
      %p31 = pneg %p25
      %p32 = scmp.eq.s32.totalorder %s16, 1
      %p33 = por %p31, %p32
      %p34 = scmp.ne.s32.totalorder %s26, %s29
      %p35 = scmp.eq.s32.totalorder %s16, 0
      %p36 = por %p34, %p35
      %p37 = scmp.ne.s32.totalorder %s26, %s29
      %p38 = scmp.eq.s32.totalorder %s21, 1
      %p39 = por %p37, %p38
      %p40 = scmp.ne.s32.totalorder %s29, %s30
      %p41 = scmp.eq.s32.totalorder %s21, 0
      %p42 = por %p40, %p41
      %p43 = scmp.ne.s32.totalorder %s29, %s30
      %p44 = scmp.eq.s32.totalorder %s22, 1
      %p45 = por %p43, %p44
      %p47 = scmp.ne.s32.totalorder %s30, %s46
      %p48 = scmp.eq.s32.totalorder %s22, 0
      %p49 = por %p47, %p48
      %s51 = sadd.s32 %s50, 1
      %p54 = scmp.eq.s32.totalorder %s16, 1
      %p55 = scmp.ne.s32.totalorder %s50, %s52
      %p56 = scmp.eq.s32.totalorder %s16, 0
      %p57 = por %p55, %p56
      %p58 = scmp.ne.s32.totalorder %s50, %s52
      %p59 = scmp.eq.s32.totalorder %s21, 1
      %p60 = por %p58, %p59
      %p61 = scmp.ne.s32.totalorder %s52, %s53
      %p62 = scmp.eq.s32.totalorder %s21, 0
      %p63 = por %p61, %p62
      %p64 = scmp.ne.s32.totalorder %s52, %s53
      %p65 = scmp.eq.s32.totalorder %s22, 1
      %p66 = por %p64, %p65
      %p68 = scmp.ne.s32.totalorder %s53, %s67
      %p69 = scmp.eq.s32.totalorder %s22, 0
      %p70 = por %p68, %p69
      %s72 = sadd.s32 %s71, 1
      %p75 = scmp.eq.s32.totalorder %s16, 1
      %p76 = scmp.ne.s32.totalorder %s71, %s73
      %p77 = scmp.eq.s32.totalorder %s16, 0
      %p78 = por %p76, %p77
      %p79 = scmp.ne.s32.totalorder %s71, %s73
      %p80 = scmp.eq.s32.totalorder %s21, 1
      %p81 = por %p79, %p80
      %p82 = scmp.ne.s32.totalorder %s73, %s74
      %p83 = scmp.eq.s32.totalorder %s21, 0
      %p84 = por %p82, %p83
      %p85 = scmp.ne.s32.totalorder %s73, %s74
      %p86 = scmp.eq.s32.totalorder %s22, 1
      %p87 = por %p85, %p86
      %p89 = scmp.ne.s32.totalorder %s74, %s88
      %p90 = scmp.eq.s32.totalorder %s22, 0
      %p91 = por %p89, %p90
      %s93 = sadd.s32 %s92, 1
      %p96 = scmp.eq.s32.totalorder %s16, 1
      %p97 = scmp.ne.s32.totalorder %s92, %s94
      %p98 = scmp.eq.s32.totalorder %s16, 0
      %p99 = por %p97, %p98
      %p100 = scmp.ne.s32.totalorder %s92, %s94
      %p101 = scmp.eq.s32.totalorder %s21, 1
      %p102 = por %p100, %p101
      %p103 = scmp.ne.s32.totalorder %s94, %s95
      %p104 = scmp.eq.s32.totalorder %s21, 0
      %p105 = por %p103, %p104
      %p106 = scmp.ne.s32.totalorder %s94, %s95
      %p107 = scmp.eq.s32.totalorder %s22, 1
      %p108 = por %p106, %p107
      %p110 = scmp.ne.s32.totalorder %s95, %s109
      %p111 = scmp.eq.s32.totalorder %s22, 0
      %p112 = por %p110, %p111
      %s114 = sadd.s32 %s113, 1
      %p117 = scmp.eq.s32.totalorder %s16, 1
      %p118 = scmp.ne.s32.totalorder %s113, %s115
      %p119 = scmp.eq.s32.totalorder %s16, 0
      %p120 = por %p118, %p119
      %p121 = scmp.ne.s32.totalorder %s113, %s115
      %p122 = scmp.eq.s32.totalorder %s21, 1
      %p123 = por %p121, %p122
      %p124 = scmp.ne.s32.totalorder %s115, %s116
      %p125 = scmp.eq.s32.totalorder %s21, 0
      %p126 = por %p124, %p125
      %p127 = scmp.ne.s32.totalorder %s115, %s116
      %p128 = scmp.eq.s32.totalorder %s22, 1
      %p129 = por %p127, %p128
      %p131 = scmp.ne.s32.totalorder %s116, %s130
      %p132 = scmp.eq.s32.totalorder %s22, 0
      %p133 = por %p131, %p132
      %s135 = sadd.s32 %s134, 1
      %p138 = scmp.eq.s32.totalorder %s16, 1
      %p139 = scmp.ne.s32.totalorder %s134, %s136
      %p140 = scmp.eq.s32.totalorder %s16, 0
      %p141 = por %p139, %p140
      %p142 = scmp.ne.s32.totalorder %s134, %s136
      %p143 = scmp.eq.s32.totalorder %s21, 1
      %p144 = por %p142, %p143
      %p145 = scmp.ne.s32.totalorder %s136, %s137
      %p146 = scmp.eq.s32.totalorder %s21, 0
      %p147 = por %p145, %p146
      %p148 = scmp.ne.s32.totalorder %s136, %s137
      %p149 = scmp.eq.s32.totalorder %s22, 1
      %p150 = por %p148, %p149
      %p152 = scmp.ne.s32.totalorder %s137, %s151
      %p153 = scmp.eq.s32.totalorder %s22, 0
      %p154 = por %p152, %p153
      %s155 = ssub.s32 %s16, %s23
      %p156 = scmp.eq.s32.totalorder %s155, 0
      %s158 = sadd.s32 %s157, 1
      %s159 = scalar_select %p156, %s157, %s158
      %p162 = pneg %p156
      %p163 = scmp.eq.s32.totalorder %s16, 1
      %p164 = por %p162, %p163
      %p165 = scmp.ne.s32.totalorder %s157, %s160
      %p166 = scmp.eq.s32.totalorder %s16, 0
      %p167 = por %p165, %p166
      %p168 = scmp.ne.s32.totalorder %s157, %s160
      %p169 = scmp.eq.s32.totalorder %s21, 1
      %p170 = por %p168, %p169
      %p171 = scmp.ne.s32.totalorder %s160, %s161
      %p172 = scmp.eq.s32.totalorder %s21, 0
      %p173 = por %p171, %p172
      %p174 = scmp.ne.s32.totalorder %s160, %s161
      %p175 = scmp.eq.s32.totalorder %s22, 1
      %p176 = por %p174, %p175
      %p178 = scmp.ne.s32.totalorder %s161, %s177
      %p179 = scmp.eq.s32.totalorder %s22, 0
      %p180 = por %p178, %p179
      %p181 = scmp.le.s32.totalorder 1, %s16
      %p182 = scmp.lt.s32.totalorder %s16, 3
      %p183 = pnand %p181, %p182
      %p184 = pneg %p183
      // Predicated region
      $region9: #{tpu_custom_call.1} parent=5 // pred_check
        _
      $region10: #{tpu_custom_call.1} parent=5 // pred_check_branch
        %186 = sbr.rel (%p183) target = $region12
      $region11: #{tpu_custom_call.1} parent=5 // pred_region
        %s187 = ssub.s32 %s16, 1
        // Predicated region
        $region13: #{tpu_custom_call.1} parent=11 // pred_check
          %p188 = pneg %p63
        $region14: #{tpu_custom_call.1} parent=11 // pred_check_branch
          %190 = sbr.rel (%p188) target = $region16
        $region15: #{tpu_custom_call.1} parent=11 // pred_region
          _
        $region16: #{tpu_custom_call.1} parent=11 // pred_fallthru
          _
        // Predicated region
        $region17: #{tpu_custom_call.1} parent=11 // pred_check
          %p191 = pneg %p84
        $region18: #{tpu_custom_call.1} parent=11 // pred_check_branch
          %193 = sbr.rel (%p191) target = $region20
        $region19: #{tpu_custom_call.1} parent=11 // pred_region
          %s195 = ssub.s32 6144, 6144
          %196 = vsyncadd [#allocation3], %s195
          %s197 = sshll.u32 [#allocation2], 4
          %s198 = int_to_ptr.vmem [resolvable:$true] %s197
          %203 = dma.hbm_to_vmem [thread:$0]  %s2, 6144, %s198, [#allocation3], 768, 768, 48
        $region20: #{tpu_custom_call.1} parent=11 // pred_fallthru
          _
        // Predicated region
        $region21: #{tpu_custom_call.1} parent=11 // pred_check
          %p204 = pneg %p105
        $region22: #{tpu_custom_call.1} parent=11 // pred_check_branch
          %206 = sbr.rel (%p204) target = $region24
        $region23: #{tpu_custom_call.1} parent=11 // pred_region
          _
        $region24: #{tpu_custom_call.1} parent=11 // pred_fallthru
          _
        // Predicated region
        $region25: #{tpu_custom_call.1} parent=11 // pred_check
          %p207 = pneg %p126
        $region26: #{tpu_custom_call.1} parent=11 // pred_check_branch
          %209 = sbr.rel (%p207) target = $region28
        $region27: #{tpu_custom_call.1} parent=11 // pred_region
          _
        $region28: #{tpu_custom_call.1} parent=11 // pred_fallthru
          _
        // Predicated region
        $region29: #{tpu_custom_call.1} parent=11 // pred_check
          %p210 = pneg %p147
        $region30: #{tpu_custom_call.1} parent=11 // pred_check_branch
          %212 = sbr.rel (%p210) target = $region32
        $region31: #{tpu_custom_call.1} parent=11 // pred_region
          _
        $region32: #{tpu_custom_call.1} parent=11 // pred_fallthru
          _
      $region12: #{tpu_custom_call.1} parent=5 // pred_fallthru
        _
      %p213 = scmp.lt.s32.totalorder %s16, 2
      // Predicated region
      $region33: #{tpu_custom_call.1} parent=5 // pred_check
        %p214 = pneg %p213
      $region34: #{tpu_custom_call.1} parent=5 // pred_check_branch
        %216 = sbr.rel (%p214) target = $region36
      $region35: #{tpu_custom_call.1} parent=5 // pred_region
        // Predicated region
        $region37: #{tpu_custom_call.1} parent=35 // pred_check
          %p217 = pneg %p36
        $region38: #{tpu_custom_call.1} parent=35 // pred_check_branch
          %219 = sbr.rel (%p217) target = $region40
        $region39: #{tpu_custom_call.1} parent=35 // pred_region
          %p220 = scmp.lt.s32.totalorder %s16, 1
          %s221 = scalar_select %p220, %s16, 1
          %s222 = smul.addr %s221, 2
          %s223 = smul.addr %s222, 8
          %s224 = scalar_lea.vmem %s0, %s223
        $region40: #{tpu_custom_call.1} parent=35 // pred_fallthru
          _
      $region36: #{tpu_custom_call.1} parent=5 // pred_fallthru
        _
      %p225 = scmp.le.s32.totalorder 1, %s16
      %p226 = scmp.lt.s32.totalorder %s16, 3
      %p227 = pnand %p225, %p226
      %p228 = pneg %p227
      // Predicated region
      $region41: #{tpu_custom_call.1} parent=5 // pred_check
        _
      $region42: #{tpu_custom_call.1} parent=5 // pred_check_branch
        %230 = sbr.rel (%p227) target = $region44
      $region43: #{tpu_custom_call.1} parent=5 // pred_region
        %s231 = ssub.s32 %s16, 1
        // Predicated region
        $region45: #{tpu_custom_call.1} parent=43 // pred_check
          %p232 = pneg %p84
        $region46: #{tpu_custom_call.1} parent=43 // pred_check_branch
          %234 = sbr.rel (%p232) target = $region48
        $region47: #{tpu_custom_call.1} parent=43 // pred_region
          %235 = dma.done [#allocation3], 6144
        $region48: #{tpu_custom_call.1} parent=43 // pred_fallthru
          _
        %p236 = scmp.lt.s32.totalorder %s21, 1
        %s237 = scalar_select %p236, %s21, 1
        %s238 = smul.addr %s237, 2
        %s239 = smul.addr %s238, 8
        %s240 = scalar_lea.vmem %s0, %s239
        %p241 = pneg %p42
        %p242 = pneg %p39
        %p243 = pneg %p63
        %p244 = pneg %p60
        %p245 = pneg %p84
        %p246 = pneg %p81
        %p247 = pneg %p105
        %p248 = pneg %p102
        %p249 = pneg %p126
        %p250 = pneg %p123
        %p251 = pneg %p147
        %p252 = pneg %p144
        %p253 = pneg %p173
        %p254 = pneg %p170
        %s255 = sand.u32 %s160, 1
        %s256 = scalar_lea.sflag [#allocation4], %s255
        %s257 = sand.u32 %s160, 1
        %s258 = smul.addr %s257, 64
        %s259 = scalar_lea.vmem [#allocation5], %s258
        %p260 = scmp.lt.s32.totalorder %s21, 1
        %s261 = scalar_select %p260, %s21, 1
        %s262 = smul.addr %s261, 2
        %s263 = smul.addr %s262, 8
        %s264 = scalar_lea.vmem %s0, %s263
        %v265 = vld [vmem:[%s264] sm:$0xff]
        %v266 = vld [vmem:[%s264 + $0x8] sm:$0xff]
        %v267 = vld [vmem:[#allocation2] sm:$0xff]
        %v268 = vld [vmem:[#allocation2 + $0x8] sm:$0xff]
        %v269 = vld [vmem:[#allocation2 + $0x10] sm:$0xff]
        %v270 = vld [vmem:[#allocation2 + $0x18] sm:$0xff]
        %v271 = vld [vmem:[#allocation2 + $0x20] sm:$0xff]
        %v272 = vld [vmem:[#allocation2 + $0x28] sm:$0xff]
        %v273 = vld [vmem:[#allocation2 + $0x30] sm:$0xff]
        %v274 = vld [vmem:[#allocation2 + $0x38] sm:$0xff]
        %v275 = vld [vmem:[#allocation2 + $0x40] sm:$0xff]
        %v276 = vld [vmem:[#allocation2 + $0x48] sm:$0xff]
        %v277 = vld [vmem:[#allocation2 + $0x50] sm:$0xff]
        %v278 = vld [vmem:[#allocation2 + $0x58] sm:$0xff]
        %v279 = vld [vmem:[#allocation2 + $0x60] sm:$0xff]
        %v280 = vld [vmem:[#allocation2 + $0x68] sm:$0xff]
        %v281 = vld [vmem:[#allocation2 + $0x70] sm:$0xff]
        %v282 = vld [vmem:[#allocation2 + $0x78] sm:$0xff]
        %v283 = vld [vmem:[#allocation2 + $0x80] sm:$0xff]
        %v284 = vld [vmem:[#allocation2 + $0x88] sm:$0xff]
        %v285 = vld [vmem:[#allocation2 + $0x90] sm:$0xff]
        %v286 = vld [vmem:[#allocation2 + $0x98] sm:$0xff]
        %v287 = vld [vmem:[#allocation2 + $0xa0] sm:$0xff]
        %v288 = vld [vmem:[#allocation2 + $0xa8] sm:$0xff]
        %v289 = vld [vmem:[#allocation2 + $0xb0] sm:$0xff]
        %v290 = vld [vmem:[#allocation2 + $0xb8] sm:$0xff]
        %v291 = vld [vmem:[#allocation2 + $0xc0] sm:$0xff]
        %v292 = vld [vmem:[#allocation2 + $0xc8] sm:$0xff]
        %v293 = vld [vmem:[#allocation2 + $0xd0] sm:$0xff]
        %v294 = vld [vmem:[#allocation2 + $0xd8] sm:$0xff]
        %v295 = vld [vmem:[#allocation2 + $0xe0] sm:$0xff]
        %v296 = vld [vmem:[#allocation2 + $0xe8] sm:$0xff]
        %v297 = vld [vmem:[#allocation2 + $0xf0] sm:$0xff]
        %v298 = vld [vmem:[#allocation2 + $0xf8] sm:$0xff]
        %v299 = vld [vmem:[#allocation2 + $0x100] sm:$0xff]
        %v300 = vld [vmem:[#allocation2 + $0x108] sm:$0xff]
        %v301 = vld [vmem:[#allocation2 + $0x110] sm:$0xff]
        %v302 = vld [vmem:[#allocation2 + $0x118] sm:$0xff]
        %v303 = vld [vmem:[#allocation2 + $0x120] sm:$0xff]
        %v304 = vld [vmem:[#allocation2 + $0x128] sm:$0xff]
        %v305 = vld [vmem:[#allocation2 + $0x130] sm:$0xff]
        %v306 = vld [vmem:[#allocation2 + $0x138] sm:$0xff]
        %v307 = vld [vmem:[#allocation2 + $0x140] sm:$0xff]
        %v308 = vld [vmem:[#allocation2 + $0x148] sm:$0xff]
        %v309 = vld [vmem:[#allocation2 + $0x150] sm:$0xff]
        %v310 = vld [vmem:[#allocation2 + $0x158] sm:$0xff]
        %v311 = vld [vmem:[#allocation2 + $0x160] sm:$0xff]
        %v312 = vld [vmem:[#allocation2 + $0x168] sm:$0xff]
        %v313 = vld [vmem:[#allocation2 + $0x170] sm:$0xff]
        %v314 = vld [vmem:[#allocation2 + $0x178] sm:$0xff]
        %vm315 = vcmask 523264
        %v317 = vsel %vm315, %v265, 0
        %v320 = vsel %vm315, %v266, 0
        %322 = vmatprep.subr.mxu0 %v268
        %323 = vmatpush1.msra.mxu0 %v267
        %324 = vmatprep.subr.mxu0 %v274
        %325 = vmatpush1.msra.mxu0 %v273
        %326 = vmatprep.subr.mxu0 %v280
        %327 = vmatpush1.msra.mxu0 %v279
        %328 = vmatprep.subr.mxu0 %v286
        %329 = vmatpush1.msra.mxu0 %v285
        %330 = vmatprep.subr.mxu0 %v292
        %331 = vmatpush1.msra.mxu0 %v291
        %332 = vmatprep.subr.mxu0 %v298
        %333 = vmatpush1.msra.mxu0 %v297
        %334 = vmatprep.subr.mxu0 %v304
        %335 = vmatpush1.msra.mxu0 %v303
        %336 = vmatprep.subr.mxu0 %v310
        %337 = vmatpush1.msra.mxu0 %v309
        %338 = vmatprep.subr.mxu0 0.0
        %339 = vmatpush1.msra.mxu0 0.0
        %340 = vmatprep.subr.mxu0 0.0
        %341 = vmatpush1.msra.mxu0 0.0
        %342 = vmatprep.subr.mxu0 0.0
        %343 = vmatpush1.msra.mxu0 0.0
        %344 = vmatprep.subr.mxu0 0.0
        %345 = vmatpush1.msra.mxu0 0.0
        %346 = vmatprep.subr.mxu0 0.0
        %347 = vmatpush1.msra.mxu0 0.0
        %348 = vmatprep.subr.mxu0 0.0
        %349 = vmatpush1.msra.mxu0 0.0
        %350 = vmatprep.subr.mxu0 0.0
        %351 = vmatpush1.msra.mxu0 0.0
        %352 = vmatprep.subr.mxu0 0.0
        %353 = vmatpush1.msra.mxu0 0.0
        %354 = vmatprep.subr.mxu0 0.0
        %355 = vmatpush1.msra.mxu0 0.0
        %356 = vmatprep.subr.mxu0 0.0
        %357 = vmatpush1.msra.mxu0 0.0
        %358 = vmatprep.subr.mxu0 0.0
        %359 = vmatpush1.msra.mxu0 0.0
        %360 = vmatprep.subr.mxu0 0.0
        %361 = vmatpush1.msra.mxu0 0.0
        %362 = vmatprep.subr.mxu0 0.0
        %363 = vmatpush1.msra.mxu0 0.0
        %364 = vmatprep.subr.mxu0 0.0
        %365 = vmatpush1.msra.mxu0 0.0
        %366 = vmatprep.subr.mxu0 0.0
        %367 = vmatpush1.msra.mxu0 0.0
        %368 = vmatprep.subr.mxu0 0.0
        %369 = vmatpush1.msra.mxu0 0.0
        %370 = vmatprep.subr.mxu0 0.0
        %371 = vmatpush1.msra.mxu0 0.0
        %372 = vmatprep.subr.mxu0 0.0
        %373 = vmatpush1.msra.mxu0 0.0
        %374 = vmatprep.subr.mxu0 0.0
        %375 = vmatpush1.msra.mxu0 0.0
        %376 = vmatprep.subr.mxu0 0.0
        %377 = vmatpush1.msra.mxu0 0.0
        %378 = vmatprep.subr.mxu0 0.0
        %379 = vmatpush1.msra.mxu0 0.0
        %380 = vmatprep.subr.mxu0 0.0
        %381 = vmatpush1.msra.mxu0 0.0
        %382 = vmatprep.subr.mxu0 0.0
        %383 = vmatpush1.msra.mxu0 0.0
        %384 = vmatprep.subr.mxu0 0.0
        %385 = vmatpush1.msra.mxu0 0.0
        %386 = vmatprep.mubr.f32.mxu0 0.0
        %387 = vmatmul.mubr.f32.gmra.mrb[0].mxu0 %v317
        %v388 = vpop.f32.mrb[0].mxu0
        %v389 = vadd.f32 0.0, %v388
        %v390 = vpop.f32.mrb[0].mxu0
        %v391 = vadd.f32 0.0, %v390
        %392 = vmatprep.mubr.f32.mxu0 0.0
        %393 = vmatmul.mubr.f32.gmra.mrb[0].mxu0 %v320
        %v394 = vpop.f32.mrb[0].mxu0
        %v395 = vadd.f32 0.0, %v394
        %v396 = vpop.f32.mrb[0].mxu0
        %v397 = vadd.f32 0.0, %v396
        %398 = vdwg.mxu0
        %399 = vmatprep.subr.mxu0 %v270
        %400 = vmatpush1.msra.mxu0 %v269
        %401 = vmatprep.subr.mxu0 %v276
        %402 = vmatpush1.msra.mxu0 %v275
        %403 = vmatprep.subr.mxu0 %v282
        %404 = vmatpush1.msra.mxu0 %v281
        %405 = vmatprep.subr.mxu0 %v288
        %406 = vmatpush1.msra.mxu0 %v287
        %407 = vmatprep.subr.mxu0 %v294
        %408 = vmatpush1.msra.mxu0 %v293
        %409 = vmatprep.subr.mxu0 %v300
        %410 = vmatpush1.msra.mxu0 %v299
        %411 = vmatprep.subr.mxu0 %v306
        %412 = vmatpush1.msra.mxu0 %v305
        %413 = vmatprep.subr.mxu0 %v312
        %414 = vmatpush1.msra.mxu0 %v311
        %415 = vmatprep.subr.mxu0 0.0
        %416 = vmatpush1.msra.mxu0 0.0
        %417 = vmatprep.subr.mxu0 0.0
        %418 = vmatpush1.msra.mxu0 0.0
        %419 = vmatprep.subr.mxu0 0.0
        %420 = vmatpush1.msra.mxu0 0.0
        %421 = vmatprep.subr.mxu0 0.0
        %422 = vmatpush1.msra.mxu0 0.0
        %423 = vmatprep.subr.mxu0 0.0
        %424 = vmatpush1.msra.mxu0 0.0
        %425 = vmatprep.subr.mxu0 0.0
        %426 = vmatpush1.msra.mxu0 0.0
        %427 = vmatprep.subr.mxu0 0.0
        %428 = vmatpush1.msra.mxu0 0.0
        %429 = vmatprep.subr.mxu0 0.0
        %430 = vmatpush1.msra.mxu0 0.0
        %431 = vmatprep.subr.mxu0 0.0
        %432 = vmatpush1.msra.mxu0 0.0
        %433 = vmatprep.subr.mxu0 0.0
        %434 = vmatpush1.msra.mxu0 0.0
        %435 = vmatprep.subr.mxu0 0.0
        %436 = vmatpush1.msra.mxu0 0.0
        %437 = vmatprep.subr.mxu0 0.0
        %438 = vmatpush1.msra.mxu0 0.0
        %439 = vmatprep.subr.mxu0 0.0
        %440 = vmatpush1.msra.mxu0 0.0
        %441 = vmatprep.subr.mxu0 0.0
        %442 = vmatpush1.msra.mxu0 0.0
        %443 = vmatprep.subr.mxu0 0.0
        %444 = vmatpush1.msra.mxu0 0.0
        %445 = vmatprep.subr.mxu0 0.0
        %446 = vmatpush1.msra.mxu0 0.0
        %447 = vmatprep.subr.mxu0 0.0
        %448 = vmatpush1.msra.mxu0 0.0
        %449 = vmatprep.subr.mxu0 0.0
        %450 = vmatpush1.msra.mxu0 0.0
        %451 = vmatprep.subr.mxu0 0.0
        %452 = vmatpush1.msra.mxu0 0.0
        %453 = vmatprep.subr.mxu0 0.0
        %454 = vmatpush1.msra.mxu0 0.0
        %455 = vmatprep.subr.mxu0 0.0
        %456 = vmatpush1.msra.mxu0 0.0
        %457 = vmatprep.subr.mxu0 0.0
        %458 = vmatpush1.msra.mxu0 0.0
        %459 = vmatprep.subr.mxu0 0.0
        %460 = vmatpush1.msra.mxu0 0.0
        %461 = vmatprep.subr.mxu0 0.0
        %462 = vmatpush1.msra.mxu0 0.0
        %463 = vmatprep.mubr.f32.mxu0 0.0
        %464 = vmatmul.mubr.f32.gmra.mrb[0].mxu0 %v317
        %v465 = vpop.f32.mrb[0].mxu0
        %v466 = vadd.f32 0.0, %v465
        %v467 = vpop.f32.mrb[0].mxu0
        %v468 = vadd.f32 0.0, %v467
        %469 = vmatprep.mubr.f32.mxu0 0.0
        %470 = vmatmul.mubr.f32.gmra.mrb[0].mxu0 %v320
        %v471 = vpop.f32.mrb[0].mxu0
        %v472 = vadd.f32 0.0, %v471
        %v473 = vpop.f32.mrb[0].mxu0
        %v474 = vadd.f32 0.0, %v473
        %475 = vdwg.mxu0
        %476 = vmatprep.subr.mxu0 %v272
        %477 = vmatpush1.msra.mxu0 %v271
        %478 = vmatprep.subr.mxu0 %v278
        %479 = vmatpush1.msra.mxu0 %v277
        %480 = vmatprep.subr.mxu0 %v284
        %481 = vmatpush1.msra.mxu0 %v283
        %482 = vmatprep.subr.mxu0 %v290
        %483 = vmatpush1.msra.mxu0 %v289
        %484 = vmatprep.subr.mxu0 %v296
        %485 = vmatpush1.msra.mxu0 %v295
        %486 = vmatprep.subr.mxu0 %v302
        %487 = vmatpush1.msra.mxu0 %v301
        %488 = vmatprep.subr.mxu0 %v308
        %489 = vmatpush1.msra.mxu0 %v307
        %490 = vmatprep.subr.mxu0 %v314
        %491 = vmatpush1.msra.mxu0 %v313
        %492 = vmatprep.subr.mxu0 0.0
        %493 = vmatpush1.msra.mxu0 0.0
        %494 = vmatprep.subr.mxu0 0.0
        %495 = vmatpush1.msra.mxu0 0.0
        %496 = vmatprep.subr.mxu0 0.0
        %497 = vmatpush1.msra.mxu0 0.0
        %498 = vmatprep.subr.mxu0 0.0
        %499 = vmatpush1.msra.mxu0 0.0
        %500 = vmatprep.subr.mxu0 0.0
        %501 = vmatpush1.msra.mxu0 0.0
        %502 = vmatprep.subr.mxu0 0.0
        %503 = vmatpush1.msra.mxu0 0.0
        %504 = vmatprep.subr.mxu0 0.0
        %505 = vmatpush1.msra.mxu0 0.0
        %506 = vmatprep.subr.mxu0 0.0
        %507 = vmatpush1.msra.mxu0 0.0
        %508 = vmatprep.subr.mxu0 0.0
        %509 = vmatpush1.msra.mxu0 0.0
        %510 = vmatprep.subr.mxu0 0.0
        %511 = vmatpush1.msra.mxu0 0.0
        %512 = vmatprep.subr.mxu0 0.0
        %513 = vmatpush1.msra.mxu0 0.0
        %514 = vmatprep.subr.mxu0 0.0
        %515 = vmatpush1.msra.mxu0 0.0
        %516 = vmatprep.subr.mxu0 0.0
        %517 = vmatpush1.msra.mxu0 0.0
        %518 = vmatprep.subr.mxu0 0.0
        %519 = vmatpush1.msra.mxu0 0.0
        %520 = vmatprep.subr.mxu0 0.0
        %521 = vmatpush1.msra.mxu0 0.0
        %522 = vmatprep.subr.mxu0 0.0
        %523 = vmatpush1.msra.mxu0 0.0
        %524 = vmatprep.subr.mxu0 0.0
        %525 = vmatpush1.msra.mxu0 0.0
        %526 = vmatprep.subr.mxu0 0.0
        %527 = vmatpush1.msra.mxu0 0.0
        %528 = vmatprep.subr.mxu0 0.0
        %529 = vmatpush1.msra.mxu0 0.0
        %530 = vmatprep.subr.mxu0 0.0
        %531 = vmatpush1.msra.mxu0 0.0
        %532 = vmatprep.subr.mxu0 0.0
        %533 = vmatpush1.msra.mxu0 0.0
        %534 = vmatprep.subr.mxu0 0.0
        %535 = vmatpush1.msra.mxu0 0.0
        %536 = vmatprep.subr.mxu0 0.0
        %537 = vmatpush1.msra.mxu0 0.0
        %538 = vmatprep.subr.mxu0 0.0
        %539 = vmatpush1.msra.mxu0 0.0
        %540 = vmatprep.mubr.f32.mxu0 0.0
        %541 = vmatmul.mubr.f32.gmra.mrb[0].mxu0 %v317
        %v542 = vpop.f32.mrb[0].mxu0
        %v543 = vadd.f32 0.0, %v542
        %v544 = vpop.f32.mrb[0].mxu0
        %v545 = vadd.f32 0.0, %v544
        %546 = vmatprep.mubr.f32.mxu0 0.0
        %547 = vmatmul.mubr.f32.gmra.mrb[0].mxu0 %v320
        %v548 = vpop.f32.mrb[0].mxu0
        %v549 = vadd.f32 0.0, %v548
        %v550 = vpop.f32.mrb[0].mxu0
        %v551 = vadd.f32 0.0, %v550
        %552 = vdwg.mxu0
        %v553 = vld [vmem:[%s1] sm:$0xff]
        %v554 = vld [vmem:[%s1 + $0x8] sm:$0xff]
        %v555 = vld [vmem:[%s1 + $0x10] sm:$0xff]
        %v556 = vld [vmem:[%s1 + $0x18] sm:$0xff]
        %s557 = scalar_lea.vmem %s1, 32
        %v558 = vld [vmem:[%s557] sm:$0xff]
        %v559 = vld [vmem:[%s557 + $0x8] sm:$0xff]
        %v560 = vld [vmem:[%s557 + $0x10] sm:$0xff]
        %v561 = vld [vmem:[%s557 + $0x18] sm:$0xff]
        %vm562 = vcmask 130048
        %v564 = vsel %vm562, %v558, 0
        %v567 = vsel %vm562, %v559, 0
        %v570 = vsel %vm562, %v560, 0
        %v573 = vsel %vm562, %v561, 0
        %575 = vmatprep.subr.mxu0 %v468
        %576 = vmatpush1.msra.mxu0 %v466
        %577 = vmatprep.subr.mxu0 %v474
        %578 = vmatpush1.msra.mxu0 %v472
        %579 = vmatprep.subr.mxu0 0.0
        %580 = vmatpush1.msra.mxu0 0.0
        %581 = vmatprep.subr.mxu0 0.0
        %582 = vmatpush1.msra.mxu0 0.0
        %583 = vmatprep.subr.mxu0 0.0
        %584 = vmatpush1.msra.mxu0 0.0
        %585 = vmatprep.subr.mxu0 0.0
        %586 = vmatpush1.msra.mxu0 0.0
        %587 = vmatprep.subr.mxu0 0.0
        %588 = vmatpush1.msra.mxu0 0.0
        %589 = vmatprep.subr.mxu0 0.0
        %590 = vmatpush1.msra.mxu0 0.0
        %591 = vmatprep.subr.mxu0 0.0
        %592 = vmatpush1.msra.mxu0 0.0
        %593 = vmatprep.subr.mxu0 0.0
        %594 = vmatpush1.msra.mxu0 0.0
        %595 = vmatprep.subr.mxu0 0.0
        %596 = vmatpush1.msra.mxu0 0.0
        %597 = vmatprep.subr.mxu0 0.0
        %598 = vmatpush1.msra.mxu0 0.0
        %599 = vmatprep.subr.mxu0 0.0
        %600 = vmatpush1.msra.mxu0 0.0
        %601 = vmatprep.subr.mxu0 0.0
        %602 = vmatpush1.msra.mxu0 0.0
        %603 = vmatprep.subr.mxu0 0.0
        %604 = vmatpush1.msra.mxu0 0.0
        %605 = vmatprep.subr.mxu0 0.0
        %606 = vmatpush1.msra.mxu0 0.0
        %607 = vmatprep.subr.mxu0 0.0
        %608 = vmatpush1.msra.mxu0 0.0
        %609 = vmatprep.subr.mxu0 0.0
        %610 = vmatpush1.msra.mxu0 0.0
        %611 = vmatprep.subr.mxu0 0.0
        %612 = vmatpush1.msra.mxu0 0.0
        %613 = vmatprep.subr.mxu0 0.0
        %614 = vmatpush1.msra.mxu0 0.0
        %615 = vmatprep.subr.mxu0 0.0
        %616 = vmatpush1.msra.mxu0 0.0
        %617 = vmatprep.subr.mxu0 0.0
        %618 = vmatpush1.msra.mxu0 0.0
        %619 = vmatprep.subr.mxu0 0.0
        %620 = vmatpush1.msra.mxu0 0.0
        %621 = vmatprep.subr.mxu0 0.0
        %622 = vmatpush1.msra.mxu0 0.0
        %623 = vmatprep.subr.mxu0 0.0
        %624 = vmatpush1.msra.mxu0 0.0
        %625 = vmatprep.subr.mxu0 0.0
        %626 = vmatpush1.msra.mxu0 0.0
        %627 = vmatprep.subr.mxu0 0.0
        %628 = vmatpush1.msra.mxu0 0.0
        %629 = vmatprep.subr.mxu0 0.0
        %630 = vmatpush1.msra.mxu0 0.0
        %631 = vmatprep.subr.mxu0 0.0
        %632 = vmatpush1.msra.mxu0 0.0
        %633 = vmatprep.subr.mxu0 0.0
        %634 = vmatpush1.msra.mxu0 0.0
        %635 = vmatprep.subr.mxu0 0.0
        %636 = vmatpush1.msra.mxu0 0.0
        %637 = vmatprep.subr.mxu0 0.0
        %638 = vmatpush1.msra.mxu0 0.0
        %639 = vmatprep.mubr.f32.mxu0 0.0
        %640 = vmatmul.mubr.f32.gmra.mrb[0].mxu0 %v564
        %v641 = vpop.f32.mrb[0].mxu0
        %v642 = vadd.f32 0.0, %v641
        %v643 = vpop.f32.mrb[0].mxu0
        %v644 = vadd.f32 0.0, %v643
        %645 = vmatprep.mubr.f32.mxu0 0.0
        %646 = vmatmul.mubr.f32.gmra.mrb[0].mxu0 %v567
        %v647 = vpop.f32.mrb[0].mxu0
        %v648 = vadd.f32 0.0, %v647
        %v649 = vpop.f32.mrb[0].mxu0
        %v650 = vadd.f32 0.0, %v649
        %651 = vmatprep.mubr.f32.mxu0 0.0
        %652 = vmatmul.mubr.f32.gmra.mrb[0].mxu0 %v570
        %v653 = vpop.f32.mrb[0].mxu0
        %v654 = vadd.f32 0.0, %v653
        %v655 = vpop.f32.mrb[0].mxu0
        %v656 = vadd.f32 0.0, %v655
        %657 = vmatprep.mubr.f32.mxu0 0.0
        %658 = vmatmul.mubr.f32.gmra.mrb[0].mxu0 %v573
        %v659 = vpop.f32.mrb[0].mxu0
        %v660 = vadd.f32 0.0, %v659
        %v661 = vpop.f32.mrb[0].mxu0
        %v662 = vadd.f32 0.0, %v661
        %663 = vdwg.mxu0
        %v665 = vsel %vm562, %v553, 0
        %v668 = vsel %vm562, %v554, 0
        %v671 = vsel %vm562, %v555, 0
        %v674 = vsel %vm562, %v556, 0
        %676 = vmatprep.subr.mxu0 %v391
        %677 = vmatpush1.msra.mxu0 %v389
        %678 = vmatprep.subr.mxu0 %v397
        %679 = vmatpush1.msra.mxu0 %v395
        %680 = vmatprep.subr.mxu0 0.0
        %681 = vmatpush1.msra.mxu0 0.0
        %682 = vmatprep.subr.mxu0 0.0
        %683 = vmatpush1.msra.mxu0 0.0
        %684 = vmatprep.subr.mxu0 0.0
        %685 = vmatpush1.msra.mxu0 0.0
        %686 = vmatprep.subr.mxu0 0.0
        %687 = vmatpush1.msra.mxu0 0.0
        %688 = vmatprep.subr.mxu0 0.0
        %689 = vmatpush1.msra.mxu0 0.0
        %690 = vmatprep.subr.mxu0 0.0
        %691 = vmatpush1.msra.mxu0 0.0
        %692 = vmatprep.subr.mxu0 0.0
        %693 = vmatpush1.msra.mxu0 0.0
        %694 = vmatprep.subr.mxu0 0.0
        %695 = vmatpush1.msra.mxu0 0.0
        %696 = vmatprep.subr.mxu0 0.0
        %697 = vmatpush1.msra.mxu0 0.0
        %698 = vmatprep.subr.mxu0 0.0
        %699 = vmatpush1.msra.mxu0 0.0
        %700 = vmatprep.subr.mxu0 0.0
        %701 = vmatpush1.msra.mxu0 0.0
        %702 = vmatprep.subr.mxu0 0.0
        %703 = vmatpush1.msra.mxu0 0.0
        %704 = vmatprep.subr.mxu0 0.0
        %705 = vmatpush1.msra.mxu0 0.0
        %706 = vmatprep.subr.mxu0 0.0
        %707 = vmatpush1.msra.mxu0 0.0
        %708 = vmatprep.subr.mxu0 0.0
        %709 = vmatpush1.msra.mxu0 0.0
        %710 = vmatprep.subr.mxu0 0.0
        %711 = vmatpush1.msra.mxu0 0.0
        %712 = vmatprep.subr.mxu0 0.0
        %713 = vmatpush1.msra.mxu0 0.0
        %714 = vmatprep.subr.mxu0 0.0
        %715 = vmatpush1.msra.mxu0 0.0
        %716 = vmatprep.subr.mxu0 0.0
        %717 = vmatpush1.msra.mxu0 0.0
        %718 = vmatprep.subr.mxu0 0.0
        %719 = vmatpush1.msra.mxu0 0.0
        %720 = vmatprep.subr.mxu0 0.0
        %721 = vmatpush1.msra.mxu0 0.0
        %722 = vmatprep.subr.mxu0 0.0
        %723 = vmatpush1.msra.mxu0 0.0
        %724 = vmatprep.subr.mxu0 0.0
        %725 = vmatpush1.msra.mxu0 0.0
        %726 = vmatprep.subr.mxu0 0.0
        %727 = vmatpush1.msra.mxu0 0.0
        %728 = vmatprep.subr.mxu0 0.0
        %729 = vmatpush1.msra.mxu0 0.0
        %730 = vmatprep.subr.mxu0 0.0
        %731 = vmatpush1.msra.mxu0 0.0
        %732 = vmatprep.subr.mxu0 0.0
        %733 = vmatpush1.msra.mxu0 0.0
        %734 = vmatprep.subr.mxu0 0.0
        %735 = vmatpush1.msra.mxu0 0.0
        %736 = vmatprep.subr.mxu0 0.0
        %737 = vmatpush1.msra.mxu0 0.0
        %738 = vmatprep.subr.mxu0 0.0
        %739 = vmatpush1.msra.mxu0 0.0
        %740 = vmatprep.mubr.f32.mxu0 0.0
        %741 = vmatmul.mubr.f32.gmra.mrb[0].mxu0 %v665
        %v742 = vpop.f32.mrb[0].mxu0
        %v743 = vadd.f32 %v642, %v742
        %v744 = vpop.f32.mrb[0].mxu0
        %v745 = vadd.f32 %v644, %v744
        %746 = vmatprep.mubr.f32.mxu0 0.0
        %747 = vmatmul.mubr.f32.gmra.mrb[0].mxu0 %v668
        %v748 = vpop.f32.mrb[0].mxu0
        %v749 = vadd.f32 %v648, %v748
        %v750 = vpop.f32.mrb[0].mxu0
        %v751 = vadd.f32 %v650, %v750
        %752 = vmatprep.mubr.f32.mxu0 0.0
        %753 = vmatmul.mubr.f32.gmra.mrb[0].mxu0 %v671
        %v754 = vpop.f32.mrb[0].mxu0
        %v755 = vadd.f32 %v654, %v754
        %v756 = vpop.f32.mrb[0].mxu0
        %v757 = vadd.f32 %v656, %v756
        %758 = vmatprep.mubr.f32.mxu0 0.0
        %759 = vmatmul.mubr.f32.gmra.mrb[0].mxu0 %v674
        %v760 = vpop.f32.mrb[0].mxu0
        %v761 = vadd.f32 %v660, %v760
        %v762 = vpop.f32.mrb[0].mxu0
        %v763 = vadd.f32 %v662, %v762
        %764 = vdwg.mxu0
        %s765 = scalar_lea.vmem %s1, 64
        %v766 = vld [vmem:[%s765] sm:$0xff]
        %v767 = vld [vmem:[%s765 + $0x8] sm:$0xff]
        %v768 = vld [vmem:[%s765 + $0x10] sm:$0xff]
        %v769 = vld [vmem:[%s765 + $0x18] sm:$0xff]
        %v771 = vsel %vm562, %v766, 0
        %v774 = vsel %vm562, %v767, 0
        %v777 = vsel %vm562, %v768, 0
        %v780 = vsel %vm562, %v769, 0
        %782 = vmatprep.subr.mxu0 %v545
        %783 = vmatpush1.msra.mxu0 %v543
        %784 = vmatprep.subr.mxu0 %v551
        %785 = vmatpush1.msra.mxu0 %v549
        %786 = vmatprep.subr.mxu0 0.0
        %787 = vmatpush1.msra.mxu0 0.0
        %788 = vmatprep.subr.mxu0 0.0
        %789 = vmatpush1.msra.mxu0 0.0
        %790 = vmatprep.subr.mxu0 0.0
        %791 = vmatpush1.msra.mxu0 0.0
        %792 = vmatprep.subr.mxu0 0.0
        %793 = vmatpush1.msra.mxu0 0.0
        %794 = vmatprep.subr.mxu0 0.0
        %795 = vmatpush1.msra.mxu0 0.0
        %796 = vmatprep.subr.mxu0 0.0
        %797 = vmatpush1.msra.mxu0 0.0
        %798 = vmatprep.subr.mxu0 0.0
        %799 = vmatpush1.msra.mxu0 0.0
        %800 = vmatprep.subr.mxu0 0.0
        %801 = vmatpush1.msra.mxu0 0.0
        %802 = vmatprep.subr.mxu0 0.0
        %803 = vmatpush1.msra.mxu0 0.0
        %804 = vmatprep.subr.mxu0 0.0
        %805 = vmatpush1.msra.mxu0 0.0
        %806 = vmatprep.subr.mxu0 0.0
        %807 = vmatpush1.msra.mxu0 0.0
        %808 = vmatprep.subr.mxu0 0.0
        %809 = vmatpush1.msra.mxu0 0.0
        %810 = vmatprep.subr.mxu0 0.0
        %811 = vmatpush1.msra.mxu0 0.0
        %812 = vmatprep.subr.mxu0 0.0
        %813 = vmatpush1.msra.mxu0 0.0
        %814 = vmatprep.subr.mxu0 0.0
        %815 = vmatpush1.msra.mxu0 0.0
        %816 = vmatprep.subr.mxu0 0.0
        %817 = vmatpush1.msra.mxu0 0.0
        %818 = vmatprep.subr.mxu0 0.0
        %819 = vmatpush1.msra.mxu0 0.0
        %820 = vmatprep.subr.mxu0 0.0
        %821 = vmatpush1.msra.mxu0 0.0
        %822 = vmatprep.subr.mxu0 0.0
        %823 = vmatpush1.msra.mxu0 0.0
        %824 = vmatprep.subr.mxu0 0.0
        %825 = vmatpush1.msra.mxu0 0.0
        %826 = vmatprep.subr.mxu0 0.0
        %827 = vmatpush1.msra.mxu0 0.0
        %828 = vmatprep.subr.mxu0 0.0
        %829 = vmatpush1.msra.mxu0 0.0
        %830 = vmatprep.subr.mxu0 0.0
        %831 = vmatpush1.msra.mxu0 0.0
        %832 = vmatprep.subr.mxu0 0.0
        %833 = vmatpush1.msra.mxu0 0.0
        %834 = vmatprep.subr.mxu0 0.0
        %835 = vmatpush1.msra.mxu0 0.0
        %836 = vmatprep.subr.mxu0 0.0
        %837 = vmatpush1.msra.mxu0 0.0
        %838 = vmatprep.subr.mxu0 0.0
        %839 = vmatpush1.msra.mxu0 0.0
        %840 = vmatprep.subr.mxu0 0.0
        %841 = vmatpush1.msra.mxu0 0.0
        %842 = vmatprep.subr.mxu0 0.0
        %843 = vmatpush1.msra.mxu0 0.0
        %844 = vmatprep.subr.mxu0 0.0
        %845 = vmatpush1.msra.mxu0 0.0
        %846 = vmatprep.mubr.f32.mxu0 0.0
        %847 = vmatmul.mubr.f32.gmra.mrb[0].mxu0 %v771
        %v848 = vpop.f32.mrb[0].mxu0
        %v849 = vadd.f32 0.0, %v848
        %v850 = vpop.f32.mrb[0].mxu0
        %v851 = vadd.f32 0.0, %v850
        %852 = vmatprep.mubr.f32.mxu0 0.0
        %853 = vmatmul.mubr.f32.gmra.mrb[0].mxu0 %v774
        %v854 = vpop.f32.mrb[0].mxu0
        %v855 = vadd.f32 0.0, %v854
        %v856 = vpop.f32.mrb[0].mxu0
        %v857 = vadd.f32 0.0, %v856
        %858 = vmatprep.mubr.f32.mxu0 0.0
        %859 = vmatmul.mubr.f32.gmra.mrb[0].mxu0 %v777
        %v860 = vpop.f32.mrb[0].mxu0
        %v861 = vadd.f32 0.0, %v860
        %v862 = vpop.f32.mrb[0].mxu0
        %v863 = vadd.f32 0.0, %v862
        %864 = vmatprep.mubr.f32.mxu0 0.0
        %865 = vmatmul.mubr.f32.gmra.mrb[0].mxu0 %v780
        %v866 = vpop.f32.mrb[0].mxu0
        %v867 = vadd.f32 0.0, %v866
        %v868 = vpop.f32.mrb[0].mxu0
        %v869 = vadd.f32 0.0, %v868
        %870 = vdwg.mxu0
        %v871 = vadd.f32 %v743, %v849
        %v872 = vadd.f32 %v745, %v851
        %v873 = vadd.f32 %v749, %v855
        %v874 = vadd.f32 %v751, %v857
        %v875 = vadd.f32 %v755, %v861
        %v876 = vadd.f32 %v757, %v863
        %v877 = vadd.f32 %v761, %v867
        %v878 = vadd.f32 %v763, %v869
        %v879 = vld [vmem:[%s3] sm:$0x3]
        %v881 = vlaneseq
        %v882 = vshrl.u32 %v881, 7
        %v883 = vsub.s32 0, %v882
        %v884 = vrot.slane %v879, %v883
        %v885 = vlaneseq
        %v886 = vshrl.u32 %v885, 7
        %v887 = vsub.s32 1, %v886
        %v888 = vrot.slane %v879, %v887
        %v891 = vmul.f32 %v871, %v884
        %v892 = vmul.f32 %v872, %v888
        %v893 = vmul.f32 %v873, %v884
        %v894 = vmul.f32 %v874, %v888
        %v895 = vmul.f32 %v875, %v884
        %v896 = vmul.f32 %v876, %v888
        %v897 = vmul.f32 %v877, %v884
        %v898 = vmul.f32 %v878, %v888
        %v899 = vld [vmem:[%s4] sm:$0x3]
        %v901 = vlaneseq
        %v902 = vshrl.u32 %v901, 7
        %v903 = vsub.s32 0, %v902
        %v904 = vrot.slane %v899, %v903
        %v905 = vlaneseq
        %v906 = vshrl.u32 %v905, 7
        %v907 = vsub.s32 1, %v906
        %v908 = vrot.slane %v899, %v907
        %v911 = vadd.f32 %v891, %v904
        %v912 = vadd.f32 %v892, %v908
        %v913 = vadd.f32 %v893, %v904
        %v914 = vadd.f32 %v894, %v908
        %v915 = vadd.f32 %v895, %v904
        %v916 = vadd.f32 %v896, %v908
        %v917 = vadd.f32 %v897, %v904
        %v918 = vadd.f32 %v898, %v908
        %vm919 = vcmp.ge.f32.partialorder %v911, 0.0
        %vm920 = vcmp.ge.f32.partialorder %v912, 0.0
        %vm921 = vcmp.ge.f32.partialorder %v913, 0.0
        %vm922 = vcmp.ge.f32.partialorder %v914, 0.0
        %vm923 = vcmp.ge.f32.partialorder %v915, 0.0
        %vm924 = vcmp.ge.f32.partialorder %v916, 0.0
        %vm925 = vcmp.ge.f32.partialorder %v917, 0.0
        %vm926 = vcmp.ge.f32.partialorder %v918, 0.0
        %v927 = vld [vmem:[%s5] sm:$0x3]
        %v929 = vlaneseq
        %v930 = vshrl.u32 %v929, 7
        %v931 = vsub.s32 0, %v930
        %v932 = vrot.slane %v927, %v931
        %v933 = vlaneseq
        %v934 = vshrl.u32 %v933, 7
        %v935 = vsub.s32 1, %v934
        %v936 = vrot.slane %v927, %v935
        %v939 = vmul.f32 %v932, %v911
        %v940 = vmul.f32 %v936, %v912
        %v941 = vmul.f32 %v932, %v913
        %v942 = vmul.f32 %v936, %v914
        %v943 = vmul.f32 %v932, %v915
        %v944 = vmul.f32 %v936, %v916
        %v945 = vmul.f32 %v932, %v917
        %v946 = vmul.f32 %v936, %v918
        %v947 = vsel %vm919, %v911, %v939
        %v948 = vsel %vm920, %v912, %v940
        %v949 = vsel %vm921, %v913, %v941
        %v950 = vsel %vm922, %v914, %v942
        %v951 = vsel %vm923, %v915, %v943
        %v952 = vsel %vm924, %v916, %v944
        %v953 = vsel %vm925, %v917, %v945
        %v954 = vsel %vm926, %v918, %v946
        %955 = vst [vmem:[%s259] sm:$0xff] %v947
        %956 = vst [vmem:[%s259 + $0x8] sm:$0xff] %v948
        %957 = vst [vmem:[%s259 + $0x10] sm:$0xff] %v949
        %958 = vst [vmem:[%s259 + $0x18] sm:$0xff] %v950
        %959 = vst [vmem:[%s259 + $0x20] sm:$0xff] %v951
        %960 = vst [vmem:[%s259 + $0x28] sm:$0xff] %v952
        %961 = vst [vmem:[%s259 + $0x30] sm:$0xff] %v953
        %962 = vst [vmem:[%s259 + $0x38] sm:$0xff] %v954
        %s963 = sand.u32 %s160, 1
        %s964 = scalar_lea.sflag [#allocation4], %s963
        %s965 = sand.u32 %s160, 1
        %s966 = smul.addr %s965, 64
        %s967 = scalar_lea.vmem [#allocation5], %s966
        // Predicated region
        $region49: #{tpu_custom_call.1} parent=43 // pred_check
          %p968 = pneg %p170
        $region50: #{tpu_custom_call.1} parent=43 // pred_check_branch
          %970 = sbr.rel (%p968) target = $region52
        $region51: #{tpu_custom_call.1} parent=43 // pred_region
          %s972 = ssub.s32 1024, 1024
          %973 = vsyncadd %s964, %s972
          %s974 = smul.addr %s21, 8
          %s975 = smul.addr %s974, 128
          %s976 = scalar_lea.hbm %s6, %s975
          %s977 = sshll.u32 %s967, 4
          %s978 = int_to_ptr.vmem [resolvable:$true] %s977
          %983 = dma.vmem_to_hbm [thread:$0]  %s978, 1024, %s976, %s964, 256, 256, 16
        $region52: #{tpu_custom_call.1} parent=43 // pred_fallthru
          _
      $region44: #{tpu_custom_call.1} parent=5 // pred_fallthru
        _
      %p984 = scmp.le.s32.totalorder 2, %s16
      // Predicated region
      $region53: #{tpu_custom_call.1} parent=5 // pred_check
        %p985 = pneg %p984
      $region54: #{tpu_custom_call.1} parent=5 // pred_check_branch
        %987 = sbr.rel (%p985) target = $region56
      $region55: #{tpu_custom_call.1} parent=5 // pred_region
        %s988 = ssub.s32 %s16, 2
        // Predicated region
        $region57: #{tpu_custom_call.1} parent=55 // pred_check
          %p989 = pneg %p176
        $region58: #{tpu_custom_call.1} parent=55 // pred_check_branch
          %991 = sbr.rel (%p989) target = $region60
        $region59: #{tpu_custom_call.1} parent=55 // pred_region
          %s992 = sand.u32 %s161, 1
          %s993 = scalar_lea.sflag [#allocation4], %s992
          %s994 = sand.u32 %s161, 1
          %s995 = smul.addr %s994, 64
          %s996 = scalar_lea.vmem [#allocation5], %s995
          %997 = dma.done %s993, 1024
        $region60: #{tpu_custom_call.1} parent=55 // pred_fallthru
          _
      $region56: #{tpu_custom_call.1} parent=5 // pred_fallthru
        _
    $region6: #{tpu_custom_call.1} parent=1 // loop_footer
      %s20 = sadd.s32 1, %s16
    $region7: #{tpu_custom_call.1} parent=1 // loop_footer_branch
      %15 = sbr.rel target = $region3
    $region8: #{tpu_custom_call.1} parent=1 // loop_exit
      _
    %998 = vsyncpa [#allocation3], 1
    %s999 = scalar_lea.sflag [#allocation3], 1
    %1000 = vsyncpa %s999, 1
    %1001 = vsyncpa [#allocation4], 1
    %s1002 = scalar_lea.sflag [#allocation4], 1
    %1003 = vsyncpa %s1002, 1

</llo_original>
